<compile_context>
chip_gen: v5e
topology: v5e:2x2
jax: 0.10.0
libtpu: 0.0.40
codegen_flags: <defaults>
</compile_context>

<pallas_src>
import jax
import jax.numpy as jnp
from jax.experimental import pallas as pl
from jax.experimental.pallas import tpu as pltpu


def _round_up(n, m):
    return ((n + m - 1) // m) * m


def _make_bidir_kernel(T, Tc, needs_mask):
    """Build the kernel body. grid = (direction d, sequential block tb)."""

    def kernel(x_ref, h0_ref, wih_ref, whh_ref, b_ref,
               out_ref, states_ref, h_scr, proj_scr):
        d = pl.program_id(0)            # 0 = forward, 1 = reverse
        tb = pl.program_id(1)           # sequential block counter
        nb = pl.num_programs(1)

        _, Bp, D = x_ref.shape
        Hp = whh_ref.shape[-1]
        cdt = whh_ref.dtype             # MXU compute dtype (bf16 or f32)

        @pl.when(tb == 0)
        def _():
            h_scr[...] = h0_ref[0]

        # Hoisted input projection for the whole block: one (Tc*Bp, D)@(D, Hp)
        # MXU matmul (biases folded), parked in VMEM scratch so the unrolled
        # recurrence keeps only a single (Bp, Hp) tile live per step.
        x2 = x_ref[...].reshape(Tc * Bp, D)
        proj = jnp.dot(x2, wih_ref[0], preferred_element_type=jnp.float32) + b_ref[0]
        proj_scr[...] = proj.reshape(Tc, Bp, Hp)

        whh = whh_ref[0]
        h = h_scr[...]

        # Time block this direction actually touches (fwd: tb, rev: nb-1-tb);
        # mirrors the BlockSpec index maps.
        tb_time = tb + d * (nb - 1 - 2 * tb)

        # TODO(synk): hold W_hh in MXU staging registers across the block
        # (pltpu.matmul_push_rhs / matmul_acc_lhs) for small-batch efficiency.
        for p in range(Tc):
            # Local time index: forward walks 0..Tc-1, reverse walks Tc-1..0.
            s = p + d * (Tc - 1 - 2 * p)
            h_new = jnp.tanh(
                proj_scr[s]
                + jnp.dot(h.astype(cdt), whh, preferred_element_type=jnp.float32))
            if needs_mask:
                valid = (tb_time * Tc + s) < T      # padded-time tail: hold state
                h = jnp.where(valid, h_new, h)
            else:
                h = h_new
            out_ref[s] = h.astype(out_ref.dtype)    # lane-dense (Bp, Hp) store

        h_scr[...] = h

        @pl.when(tb == nb - 1)
        def _():
            states_ref[0] = h       # final hidden state of this direction

    return kernel


def bidir_layer(x, states, params, *, compute_dtype=jnp.bfloat16,
                out_dtype=None, time_block=32):
    """x: (T, B, D); states: [h0_fwd, h0_rev] each (B, H);
    params: [(W_ih, W_hh, b_ih, b_hh) per direction].
    Returns (out (T, B, 2H), [h_fwd_final, h_rev_final])."""
    x = jnp.asarray(x, jnp.float32)
    T, B, D = x.shape
    (wih_f, whh_f, bih_f, bhh_f), (wih_r, whh_r, bih_r, bhh_r) = params
    H = wih_f.shape[0]
    if out_dtype is None:
        out_dtype = compute_dtype   # bf16 fast path -> halve output writeback

    Bp = _round_up(B, 8)            # sublane-pad batch
    Hp = _round_up(H, 128)          # lane-pad hidden
    Tc = min(time_block, T)         # timesteps per grid step
    nb = -(-T // Tc)                # number of sequential blocks
    Tp = nb * Tc                    # time padded up (tail masked in-kernel)
    needs_mask = (Tp != T)

    # Zero padding is state-preserving for hidden/batch padding; padded time
    # steps are explicitly masked inside the kernel.
    x_p = jnp.pad(x, ((0, Tp - T), (0, Bp - B), (0, 0))).astype(compute_dtype)
    h0 = jnp.stack([
        jnp.pad(jnp.asarray(states[0], jnp.float32), ((0, Bp - B), (0, Hp - H))),
        jnp.pad(jnp.asarray(states[1], jnp.float32), ((0, Bp - B), (0, Hp - H))),
    ])                                                      # (2, Bp, Hp) f32

    def prep(wih, whh, bih, bhh):
        wih_t = jnp.pad(wih.T.astype(compute_dtype), ((0, 0), (0, Hp - H)))
        whh_t = jnp.pad(whh.T.astype(compute_dtype), ((0, Hp - H), (0, Hp - H)))
        b = jnp.pad((bih + bhh).astype(jnp.float32), (0, Hp - H)).reshape(1, Hp)
        return wih_t, whh_t, b

    pf = prep(wih_f, whh_f, bih_f, bhh_f)
    pr = prep(wih_r, whh_r, bih_r, bhh_r)
    wih_s = jnp.stack([pf[0], pr[0]])       # (2, D, Hp)   compute dtype
    whh_s = jnp.stack([pf[1], pr[1]])       # (2, Hp, Hp)  compute dtype
    b_s = jnp.stack([pf[2], pr[2]])         # (2, 1, Hp)   f32

    def time_blk(d, tb):                    # time block processed at (d, tb)
        return tb + d * (nb - 1 - 2 * tb)

    # Rough VMEM request (double-buffered streamed blocks + resident operands
    # + scratch); clamp to a safe explicit scoped limit.
    x_esz = jnp.dtype(compute_dtype).itemsize
    o_esz = jnp.dtype(out_dtype).itemsize
    est = (2 * Tc * Bp * D * x_esz
           + 2 * Tc * Bp * Hp * o_esz
           + 2 * (D * Hp + Hp * Hp) * x_esz
           + 2 * (Bp * Hp + Hp) * 4
           + 4 * Bp * Hp * 4
           + (Tc + 1) * Bp * Hp * 4)
    vmem_limit = int(min(64 * 1024 * 1024, max(32 * 1024 * 1024, 2 * est)))

    out_p, st_p = pl.pallas_call(
        _make_bidir_kernel(T, Tc, needs_mask),
        out_shape=(jax.ShapeDtypeStruct((Tp, Bp, 2 * Hp), out_dtype),
                   jax.ShapeDtypeStruct((2, Bp, Hp), jnp.float32)),
        grid_spec=pltpu.PrefetchScalarGridSpec(
            num_scalar_prefetch=0,
            grid=(2, nb),                    # (direction, sequential time blocks)
            in_specs=[
                pl.BlockSpec((Tc, Bp, D), lambda d, tb: (time_blk(d, tb), 0, 0)),  # x
                pl.BlockSpec((1, Bp, Hp), lambda d, tb: (d, 0, 0)),   # h0 (per dir)
                pl.BlockSpec((1, D, Hp), lambda d, tb: (d, 0, 0)),    # W_ih^T
                pl.BlockSpec((1, Hp, Hp), lambda d, tb: (d, 0, 0)),   # W_hh^T
                pl.BlockSpec((1, 1, Hp), lambda d, tb: (d, 0, 0)),    # folded bias
            ],
            out_specs=[
                # Single (T, B, 2H) output: forward -> lane block 0, reverse -> 1.
                pl.BlockSpec((Tc, Bp, Hp), lambda d, tb: (time_blk(d, tb), 0, d)),
                pl.BlockSpec((1, Bp, Hp), lambda d, tb: (d, 0, 0)),   # final states
            ],
            scratch_shapes=[pltpu.VMEM((Bp, Hp), jnp.float32),        # carried h
                            pltpu.VMEM((Tc, Bp, Hp), jnp.float32)],   # block proj
        ),
        compiler_params=pltpu.CompilerParams(
            dimension_semantics=("parallel", "arbitrary"),   # dirs independent;
            vmem_limit_bytes=vmem_limit),                    # time is sequential
    )(x_p, h0, wih_s, whh_s, b_s)

    if T == Tp and B == Bp and H == Hp:
        out = out_p            # already the concatenated layout: zero-copy
    else:
        out = jnp.concatenate([out_p[:T, :B, :H], out_p[:T, :B, Hp:Hp + H]], -1)
    output_states = [st_p[0, :B, :H], st_p[1, :B, :H]]
    return out, output_states


def _ref_bidir(x, states, params):
    """Pure-JAX reference reproducing the PyTorch module semantics."""
    def cell(x_t, h, w):
        wih, whh, bih, bhh = w
        return jnp.tanh(x_t @ wih.T + bih + h @ whh.T + bhh)

    T = x.shape[0]
    h = states[0]
    outs_f = []
    for t in range(T):
        h = cell(x[t], h, params[0])
        outs_f.append(h)
    hf = h
    h = states[1]
    outs_r = [None] * T
    for i in range(T):
        j = T - i - 1
        h = cell(x[j], h, params[1])
        outs_r[j] = h
    hr = h
    out = jnp.concatenate([jnp.stack(outs_f), jnp.stack(outs_r)], axis=-1)
    return out, [hf, hr]


def _make_case(key, T, B, D, H):
    ks = jax.random.split(key, 11)
    x = jax.random.normal(ks[0], (T, B, D), dtype=jnp.float32)
    h0_f = jax.random.normal(ks[1], (B, H), dtype=jnp.float32)
    h0_r = jax.random.normal(ks[2], (B, H), dtype=jnp.float32)

    def mk(kw, kh, kb1, kb2):
        s = 0.1
        return (s * jax.random.normal(kw, (H, D), dtype=jnp.float32),
                s * jax.random.normal(kh, (H, H), dtype=jnp.float32),
                s * jax.random.normal(kb1, (H,), dtype=jnp.float32),
                s * jax.random.normal(kb2, (H,), dtype=jnp.float32))

    params = [mk(ks[3], ks[4], ks[5], ks[6]),      # forward cell
              mk(ks[7], ks[8], ks[9], ks[10])]     # reverse cell
    return x, [h0_f, h0_r], params


if __name__ == "__main__":
    key = jax.random.PRNGKey(0)
    k1, k2 = jax.random.split(key)

    # --- Case 1: seq=8, batch=2, input=4, hidden=32 (single time block) -----
    T, B, D, H = 8, 2, 4, 32
    x, states, params = _make_case(k1, T, B, D, H)
    ref_out, ref_states = _ref_bidir(x, states, params)

    # Exact path (f32 matmuls, f32 outputs).
    out32, st32 = bidir_layer(x, states, params, compute_dtype=jnp.float32)
    jax.block_until_ready(out32)
    jax.block_until_ready(st32)
    assert out32.shape == (T, B, 2 * H)
    assert jnp.allclose(out32, ref_out, atol=1e-5, rtol=1e-5)
    assert jnp.allclose(st32[0], ref_states[0], atol=1e-5, rtol=1e-5)
    assert jnp.allclose(st32[1], ref_states[1], atol=1e-5, rtol=1e-5)

    # Fast path (bf16 MXU inputs + bf16 outputs, f32 accumulation/tanh/state).
    out16, st16 = bidir_layer(x, states, params, compute_dtype=jnp.bfloat16)
    jax.block_until_ready(out16)
    jax.block_until_ready(st16)
    assert out16.shape == (T, B, 2 * H)
    assert jnp.allclose(out16, ref_out, atol=7.5e-2, rtol=7.5e-2)
    assert jnp.allclose(st16[0], ref_states[0], atol=7.5e-2, rtol=7.5e-2)
    assert jnp.allclose(st16[1], ref_states[1], atol=7.5e-2, rtol=7.5e-2)

    # --- Case 2: awkward T=13 (time padding + masking), multi-block grid ----
    T2, B2, D2, H2 = 13, 3, 5, 40
    x2, states2, params2 = _make_case(k2, T2, B2, D2, H2)
    ref_out2, ref_states2 = _ref_bidir(x2, states2, params2)
    out2, st2 = bidir_layer(x2, states2, params2,
                            compute_dtype=jnp.float32, time_block=4)
    jax.block_until_ready(out2)
    jax.block_until_ready(st2)
    assert out2.shape == (T2, B2, 2 * H2)
    assert jnp.allclose(out2, ref_out2, atol=5e-4, rtol=5e-4)
    assert jnp.allclose(st2[0], ref_states2[0], atol=5e-4, rtol=5e-4)
    assert jnp.allclose(st2[1], ref_states2[1], atol=5e-4, rtol=5e-4)

    print("KERNEL_OK")
</pallas_src>

<mosaic_0001>
module attributes {stable_mosaic.version = 11 : i64} {
  func.func @kernel(%arg0: i32, %arg1: i32, %arg2: memref<8x8x4xf32, #tpu.memory_space<vmem>>, %arg3: memref<1x8x128xf32, #tpu.memory_space<vmem>>, %arg4: memref<1x4x128xf32, #tpu.memory_space<vmem>>, %arg5: memref<1x128x128xf32, #tpu.memory_space<vmem>>, %arg6: memref<1x1x128xf32, #tpu.memory_space<vmem>>, %arg7: memref<8x8x128xf32, #tpu.memory_space<vmem>>, %arg8: memref<1x8x128xf32, #tpu.memory_space<vmem>>, %arg9: memref<8x128xf32, #tpu.memory_space<vmem>>, %arg10: memref<8x8x128xf32, #tpu.memory_space<vmem>>) attributes {dimension_semantics = [#tpu.dimension_semantics<parallel>, #tpu.dimension_semantics<arbitrary>], iteration_bounds = array<i64: 2, 1>, scalar_prefetch = 0 : i64, scratch_operands = 2 : i64, tpu.core_type = #tpu.core_type<tc>, window_params = [{transform_indices = @transform_0, window_bounds = array<i64: 8, 8, 4>}, {transform_indices = @transform_1, window_bounds = array<i64: 1, 8, 128>}, {transform_indices = @transform_2, window_bounds = array<i64: 1, 4, 128>}, {transform_indices = @transform_3, window_bounds = array<i64: 1, 128, 128>}, {transform_indices = @transform_4, window_bounds = array<i64: 1, 1, 128>}, {transform_indices = @transform_5, window_bounds = array<i64: 8, 8, 128>}, {transform_indices = @transform_6, window_bounds = array<i64: 1, 8, 128>}]} {
    %c0_i32 = arith.constant 0 : i32
    %0 = arith.cmpi eq, %arg1, %c0_i32 : i32
    %1 = arith.extui %0 : i1 to i32
    %c0_i32_0 = arith.constant 0 : i32
    %2 = arith.cmpi ne, %1, %c0_i32_0 : i32
    scf.if %2 {
      %c0_66 = arith.constant 0 : index
      %c0_67 = arith.constant 0 : index
      %c0_68 = arith.constant 0 : index
      %117 = vector.load %arg3[%c0_66, %c0_67, %c0_68] : memref<1x8x128xf32, #tpu.memory_space<vmem>>, vector<1x8x128xf32>
      %118 = vector.shape_cast %117 : vector<1x8x128xf32> to vector<8x128xf32>
      %c0_69 = arith.constant 0 : index
      %c0_70 = arith.constant 0 : index
      %119 = vector.load %arg9[%c0_69, %c0_70] : memref<8x128xf32, #tpu.memory_space<vmem>>, vector<8x128xf32>
      tpu.vector_store %arg9[%c0_69, %c0_70], %118 {strides = array<i32>} : memref<8x128xf32, #tpu.memory_space<vmem>>, vector<8x128xf32>,
    } else {
    }
    %c0 = arith.constant 0 : index
    %c0_1 = arith.constant 0 : index
    %c0_2 = arith.constant 0 : index
    %3 = vector.load %arg2[%c0, %c0_1, %c0_2] : memref<8x8x4xf32, #tpu.memory_space<vmem>>, vector<8x8x4xf32>
    %4 = vector.shape_cast %3 : vector<8x8x4xf32> to vector<64x4xf32>
    %c0_3 = arith.constant 0 : index
    %c0_4 = arith.constant 0 : index
    %c0_5 = arith.constant 0 : index
    %5 = vector.load %arg4[%c0_3, %c0_4, %c0_5] : memref<1x4x128xf32, #tpu.memory_space<vmem>>, vector<1x4x128xf32>
    %6 = vector.shape_cast %5 : vector<1x4x128xf32> to vector<4x128xf32>
    %cst = arith.constant dense<0.000000e+00> : vector<64x128xf32>
    %7 = tpu.matmul %4, %6, %cst {dimension_numbers = #tpu.dot_dimension_numbers<[1], [0], [0], [1], [0, 0, 1, 1], [], []>} : vector<64x4xf32>, vector<4x128xf32>, vector<64x128xf32> -> vector<64x128xf32>
    %c0_6 = arith.constant 0 : index
    %c0_7 = arith.constant 0 : index
    %c0_8 = arith.constant 0 : index
    %8 = vector.load %arg6[%c0_6, %c0_7, %c0_8] : memref<1x1x128xf32, #tpu.memory_space<vmem>>, vector<1x1x128xf32>
    %9 = vector.shape_cast %8 : vector<1x1x128xf32> to vector<1x128xf32>
    %10 = vector.broadcast %9 : vector<1x128xf32> to vector<64x128xf32>
    %11 = arith.addf %7, %10 : vector<64x128xf32>
    %12 = vector.shape_cast %11 : vector<64x128xf32> to vector<8x8x128xf32>
    %c0_9 = arith.constant 0 : index
    %c0_10 = arith.constant 0 : index
    %c0_11 = arith.constant 0 : index
    %13 = vector.load %arg10[%c0_9, %c0_10, %c0_11] : memref<8x8x128xf32, #tpu.memory_space<vmem>>, vector<8x8x128xf32>
    tpu.vector_store %arg10[%c0_9, %c0_10, %c0_11], %12 {strides = array<i32>} : memref<8x8x128xf32, #tpu.memory_space<vmem>>, vector<8x8x128xf32>,
    %c0_12 = arith.constant 0 : index
    %c0_13 = arith.constant 0 : index
    %c0_14 = arith.constant 0 : index
    %14 = vector.load %arg5[%c0_12, %c0_13, %c0_14] : memref<1x128x128xf32, #tpu.memory_space<vmem>>, vector<1x128x128xf32>
    %15 = vector.shape_cast %14 : vector<1x128x128xf32> to vector<128x128xf32>
    %c0_15 = arith.constant 0 : index
    %c0_16 = arith.constant 0 : index
    %16 = vector.load %arg9[%c0_15, %c0_16] : memref<8x128xf32, #tpu.memory_space<vmem>>, vector<8x128xf32>
    %c7_i32 = arith.constant 7 : i32
    %17 = arith.muli %arg0, %c7_i32 : i32
    %c0_i32_17 = arith.constant 0 : i32
    %18 = arith.addi %c0_i32_17, %17 : i32
    %19 = arith.index_cast %18 : i32 to index
    %c0_18 = arith.constant 0 : index
    %c0_19 = arith.constant 0 : index
    %20 = vector.load %arg10[%19, %c0_18, %c0_19] : memref<8x8x128xf32, #tpu.memory_space<vmem>>, vector<1x8x128xf32>
    %21 = vector.shape_cast %20 : vector<1x8x128xf32> to vector<8x128xf32>
    %cst_20 = arith.constant dense<0.000000e+00> : vector<8x128xf32>
    %22 = tpu.matmul %16, %15, %cst_20 {dimension_numbers = #tpu.dot_dimension_numbers<[1], [0], [0], [1], [0, 0, 1, 1], [], []>} : vector<8x128xf32>, vector<128x128xf32>, vector<8x128xf32> -> vector<8x128xf32>
    %23 = arith.addf %21, %22 : vector<8x128xf32>
    %24 = math.tanh %23 : vector<8x128xf32>
    %25 = arith.index_cast %18 : i32 to index
    %c0_21 = arith.constant 0 : index
    %c0_22 = arith.constant 0 : index
    %26 = vector.load %arg7[%25, %c0_21, %c0_22] : memref<8x8x128xf32, #tpu.memory_space<vmem>>, vector<1x8x128xf32>
    %27 = vector.shape_cast %26 : vector<1x8x128xf32> to vector<8x128xf32>
    %28 = vector.shape_cast %24 : vector<8x128xf32> to vector<1x8x128xf32>
    tpu.vector_store %arg7[%25, %c0_21, %c0_22], %28 {strides = array<i32>} : memref<8x8x128xf32, #tpu.memory_space<vmem>>, vector<1x8x128xf32>,
    %c5_i32 = arith.constant 5 : i32
    %29 = arith.muli %arg0, %c5_i32 : i32
    %c1_i32 = arith.constant 1 : i32
    %30 = arith.addi %c1_i32, %29 : i32
    %31 = arith.index_cast %30 : i32 to index
    %c0_23 = arith.constant 0 : index
    %c0_24 = arith.constant 0 : index
    %32 = vector.load %arg10[%31, %c0_23, %c0_24] : memref<8x8x128xf32, #tpu.memory_space<vmem>>, vector<1x8x128xf32>
    %33 = vector.shape_cast %32 : vector<1x8x128xf32> to vector<8x128xf32>
    %cst_25 = arith.constant dense<0.000000e+00> : vector<8x128xf32>
    %34 = tpu.matmul %24, %15, %cst_25 {dimension_numbers = #tpu.dot_dimension_numbers<[1], [0], [0], [1], [0, 0, 1, 1], [], []>} : vector<8x128xf32>, vector<128x128xf32>, vector<8x128xf32> -> vector<8x128xf32>
    %35 = arith.addf %33, %34 : vector<8x128xf32>
    %36 = math.tanh %35 : vector<8x128xf32>
    %37 = arith.index_cast %30 : i32 to index
    %c0_26 = arith.constant 0 : index
    %c0_27 = arith.constant 0 : index
    %38 = vector.load %arg7[%37, %c0_26, %c0_27] : memref<8x8x128xf32, #tpu.memory_space<vmem>>, vector<1x8x128xf32>
    %39 = vector.shape_cast %38 : vector<1x8x128xf32> to vector<8x128xf32>
    %40 = vector.shape_cast %36 : vector<8x128xf32> to vector<1x8x128xf32>
    tpu.vector_store %arg7[%37, %c0_26, %c0_27], %40 {strides = array<i32>} : memref<8x8x128xf32, #tpu.memory_space<vmem>>, vector<1x8x128xf32>,
    %c3_i32 = arith.constant 3 : i32
    %41 = arith.muli %arg0, %c3_i32 : i32
    %c2_i32 = arith.constant 2 : i32
    %42 = arith.addi %c2_i32, %41 : i32
    %43 = arith.index_cast %42 : i32 to index
    %c0_28 = arith.constant 0 : index
    %c0_29 = arith.constant 0 : index
    %44 = vector.load %arg10[%43, %c0_28, %c0_29] : memref<8x8x128xf32, #tpu.memory_space<vmem>>, vector<1x8x128xf32>
    %45 = vector.shape_cast %44 : vector<1x8x128xf32> to vector<8x128xf32>
    %cst_30 = arith.constant dense<0.000000e+00> : vector<8x128xf32>
    %46 = tpu.matmul %36, %15, %cst_30 {dimension_numbers = #tpu.dot_dimension_numbers<[1], [0], [0], [1], [0, 0, 1, 1], [], []>} : vector<8x128xf32>, vector<128x128xf32>, vector<8x128xf32> -> vector<8x128xf32>
    %47 = arith.addf %45, %46 : vector<8x128xf32>
    %48 = math.tanh %47 : vector<8x128xf32>
    %49 = arith.index_cast %42 : i32 to index
    %c0_31 = arith.constant 0 : index
    %c0_32 = arith.constant 0 : index
    %50 = vector.load %arg7[%49, %c0_31, %c0_32] : memref<8x8x128xf32, #tpu.memory_space<vmem>>, vector<1x8x128xf32>
    %51 = vector.shape_cast %50 : vector<1x8x128xf32> to vector<8x128xf32>
    %52 = vector.shape_cast %48 : vector<8x128xf32> to vector<1x8x128xf32>
    tpu.vector_store %arg7[%49, %c0_31, %c0_32], %52 {strides = array<i32>} : memref<8x8x128xf32, #tpu.memory_space<vmem>>, vector<1x8x128xf32>,
    %c1_i32_33 = arith.constant 1 : i32
    %53 = arith.muli %arg0, %c1_i32_33 : i32
    %c3_i32_34 = arith.constant 3 : i32
    %54 = arith.addi %c3_i32_34, %53 : i32
    %55 = arith.index_cast %54 : i32 to index
    %c0_35 = arith.constant 0 : index
    %c0_36 = arith.constant 0 : index
    %56 = vector.load %arg10[%55, %c0_35, %c0_36] : memref<8x8x128xf32, #tpu.memory_space<vmem>>, vector<1x8x128xf32>
    %57 = vector.shape_cast %56 : vector<1x8x128xf32> to vector<8x128xf32>
    %cst_37 = arith.constant dense<0.000000e+00> : vector<8x128xf32>
    %58 = tpu.matmul %48, %15, %cst_37 {dimension_numbers = #tpu.dot_dimension_numbers<[1], [0], [0], [1], [0, 0, 1, 1], [], []>} : vector<8x128xf32>, vector<128x128xf32>, vector<8x128xf32> -> vector<8x128xf32>
    %59 = arith.addf %57, %58 : vector<8x128xf32>
    %60 = math.tanh %59 : vector<8x128xf32>
    %61 = arith.index_cast %54 : i32 to index
    %c0_38 = arith.constant 0 : index
    %c0_39 = arith.constant 0 : index
    %62 = vector.load %arg7[%61, %c0_38, %c0_39] : memref<8x8x128xf32, #tpu.memory_space<vmem>>, vector<1x8x128xf32>
    %63 = vector.shape_cast %62 : vector<1x8x128xf32> to vector<8x128xf32>
    %64 = vector.shape_cast %60 : vector<8x128xf32> to vector<1x8x128xf32>
    tpu.vector_store %arg7[%61, %c0_38, %c0_39], %64 {strides = array<i32>} : memref<8x8x128xf32, #tpu.memory_space<vmem>>, vector<1x8x128xf32>,
    %c-1_i32 = arith.constant -1 : i32
    %65 = arith.muli %arg0, %c-1_i32 : i32
    %c4_i32 = arith.constant 4 : i32
    %66 = arith.addi %c4_i32, %65 : i32
    %67 = arith.index_cast %66 : i32 to index
    %c0_40 = arith.constant 0 : index
    %c0_41 = arith.constant 0 : index
    %68 = vector.load %arg10[%67, %c0_40, %c0_41] : memref<8x8x128xf32, #tpu.memory_space<vmem>>, vector<1x8x128xf32>
    %69 = vector.shape_cast %68 : vector<1x8x128xf32> to vector<8x128xf32>
    %cst_42 = arith.constant dense<0.000000e+00> : vector<8x128xf32>
    %70 = tpu.matmul %60, %15, %cst_42 {dimension_numbers = #tpu.dot_dimension_numbers<[1], [0], [0], [1], [0, 0, 1, 1], [], []>} : vector<8x128xf32>, vector<128x128xf32>, vector<8x128xf32> -> vector<8x128xf32>
    %71 = arith.addf %69, %70 : vector<8x128xf32>
    %72 = math.tanh %71 : vector<8x128xf32>
    %73 = arith.index_cast %66 : i32 to index
    %c0_43 = arith.constant 0 : index
    %c0_44 = arith.constant 0 : index
    %74 = vector.load %arg7[%73, %c0_43, %c0_44] : memref<8x8x128xf32, #tpu.memory_space<vmem>>, vector<1x8x128xf32>
    %75 = vector.shape_cast %74 : vector<1x8x128xf32> to vector<8x128xf32>
    %76 = vector.shape_cast %72 : vector<8x128xf32> to vector<1x8x128xf32>
    tpu.vector_store %arg7[%73, %c0_43, %c0_44], %76 {strides = array<i32>} : memref<8x8x128xf32, #tpu.memory_space<vmem>>, vector<1x8x128xf32>,
    %c-3_i32 = arith.constant -3 : i32
    %77 = arith.muli %arg0, %c-3_i32 : i32
    %c5_i32_45 = arith.constant 5 : i32
    %78 = arith.addi %c5_i32_45, %77 : i32
    %79 = arith.index_cast %78 : i32 to index
    %c0_46 = arith.constant 0 : index
    %c0_47 = arith.constant 0 : index
    %80 = vector.load %arg10[%79, %c0_46, %c0_47] : memref<8x8x128xf32, #tpu.memory_space<vmem>>, vector<1x8x128xf32>
    %81 = vector.shape_cast %80 : vector<1x8x128xf32> to vector<8x128xf32>
    %cst_48 = arith.constant dense<0.000000e+00> : vector<8x128xf32>
    %82 = tpu.matmul %72, %15, %cst_48 {dimension_numbers = #tpu.dot_dimension_numbers<[1], [0], [0], [1], [0, 0, 1, 1], [], []>} : vector<8x128xf32>, vector<128x128xf32>, vector<8x128xf32> -> vector<8x128xf32>
    %83 = arith.addf %81, %82 : vector<8x128xf32>
    %84 = math.tanh %83 : vector<8x128xf32>
    %85 = arith.index_cast %78 : i32 to index
    %c0_49 = arith.constant 0 : index
    %c0_50 = arith.constant 0 : index
    %86 = vector.load %arg7[%85, %c0_49, %c0_50] : memref<8x8x128xf32, #tpu.memory_space<vmem>>, vector<1x8x128xf32>
    %87 = vector.shape_cast %86 : vector<1x8x128xf32> to vector<8x128xf32>
    %88 = vector.shape_cast %84 : vector<8x128xf32> to vector<1x8x128xf32>
    tpu.vector_store %arg7[%85, %c0_49, %c0_50], %88 {strides = array<i32>} : memref<8x8x128xf32, #tpu.memory_space<vmem>>, vector<1x8x128xf32>,
    %c-5_i32 = arith.constant -5 : i32
    %89 = arith.muli %arg0, %c-5_i32 : i32
    %c6_i32 = arith.constant 6 : i32
    %90 = arith.addi %c6_i32, %89 : i32
    %91 = arith.index_cast %90 : i32 to index
    %c0_51 = arith.constant 0 : index
    %c0_52 = arith.constant 0 : index
    %92 = vector.load %arg10[%91, %c0_51, %c0_52] : memref<8x8x128xf32, #tpu.memory_space<vmem>>, vector<1x8x128xf32>
    %93 = vector.shape_cast %92 : vector<1x8x128xf32> to vector<8x128xf32>
    %cst_53 = arith.constant dense<0.000000e+00> : vector<8x128xf32>
    %94 = tpu.matmul %84, %15, %cst_53 {dimension_numbers = #tpu.dot_dimension_numbers<[1], [0], [0], [1], [0, 0, 1, 1], [], []>} : vector<8x128xf32>, vector<128x128xf32>, vector<8x128xf32> -> vector<8x128xf32>
    %95 = arith.addf %93, %94 : vector<8x128xf32>
    %96 = math.tanh %95 : vector<8x128xf32>
    %97 = arith.index_cast %90 : i32 to index
    %c0_54 = arith.constant 0 : index
    %c0_55 = arith.constant 0 : index
    %98 = vector.load %arg7[%97, %c0_54, %c0_55] : memref<8x8x128xf32, #tpu.memory_space<vmem>>, vector<1x8x128xf32>
    %99 = vector.shape_cast %98 : vector<1x8x128xf32> to vector<8x128xf32>
    %100 = vector.shape_cast %96 : vector<8x128xf32> to vector<1x8x128xf32>
    tpu.vector_store %arg7[%97, %c0_54, %c0_55], %100 {strides = array<i32>} : memref<8x8x128xf32, #tpu.memory_space<vmem>>, vector<1x8x128xf32>,
    %c-7_i32 = arith.constant -7 : i32
    %101 = arith.muli %arg0, %c-7_i32 : i32
    %c7_i32_56 = arith.constant 7 : i32
    %102 = arith.addi %c7_i32_56, %101 : i32
    %103 = arith.index_cast %102 : i32 to index
    %c0_57 = arith.constant 0 : index
    %c0_58 = arith.constant 0 : index
    %104 = vector.load %arg10[%103, %c0_57, %c0_58] : memref<8x8x128xf32, #tpu.memory_space<vmem>>, vector<1x8x128xf32>
    %105 = vector.shape_cast %104 : vector<1x8x128xf32> to vector<8x128xf32>
    %cst_59 = arith.constant dense<0.000000e+00> : vector<8x128xf32>
    %106 = tpu.matmul %96, %15, %cst_59 {dimension_numbers = #tpu.dot_dimension_numbers<[1], [0], [0], [1], [0, 0, 1, 1], [], []>} : vector<8x128xf32>, vector<128x128xf32>, vector<8x128xf32> -> vector<8x128xf32>
    %107 = arith.addf %105, %106 : vector<8x128xf32>
    %108 = math.tanh %107 : vector<8x128xf32>
    %109 = arith.index_cast %102 : i32 to index
    %c0_60 = arith.constant 0 : index
    %c0_61 = arith.constant 0 : index
    %110 = vector.load %arg7[%109, %c0_60, %c0_61] : memref<8x8x128xf32, #tpu.memory_space<vmem>>, vector<1x8x128xf32>
    %111 = vector.shape_cast %110 : vector<1x8x128xf32> to vector<8x128xf32>
    %112 = vector.shape_cast %108 : vector<8x128xf32> to vector<1x8x128xf32>
    tpu.vector_store %arg7[%109, %c0_60, %c0_61], %112 {strides = array<i32>} : memref<8x8x128xf32, #tpu.memory_space<vmem>>, vector<1x8x128xf32>,
    %c0_62 = arith.constant 0 : index
    %c0_63 = arith.constant 0 : index
    %113 = vector.load %arg9[%c0_62, %c0_63] : memref<8x128xf32, #tpu.memory_space<vmem>>, vector<8x128xf32>
    tpu.vector_store %arg9[%c0_62, %c0_63], %108 {strides = array<i32>} : memref<8x128xf32, #tpu.memory_space<vmem>>, vector<8x128xf32>,
    %c0_i32_64 = arith.constant 0 : i32
    %114 = arith.cmpi eq, %arg1, %c0_i32_64 : i32
    %115 = arith.extui %114 : i1 to i32
    %c0_i32_65 = arith.constant 0 : i32
    %116 = arith.cmpi ne, %115, %c0_i32_65 : i32
    scf.if %116 {
      %c0_66 = arith.constant 0 : index
      %c0_67 = arith.constant 0 : index
      %c0_68 = arith.constant 0 : index
      %117 = vector.load %arg8[%c0_66, %c0_67, %c0_68] : memref<1x8x128xf32, #tpu.memory_space<vmem>>, vector<1x8x128xf32>
      %118 = vector.shape_cast %117 : vector<1x8x128xf32> to vector<8x128xf32>
      %119 = vector.shape_cast %108 : vector<8x128xf32> to vector<1x8x128xf32>
      tpu.vector_store %arg8[%c0_66, %c0_67, %c0_68], %119 {strides = array<i32>} : memref<1x8x128xf32, #tpu.memory_space<vmem>>, vector<1x8x128xf32>,
    } else {
    }
    return
  }
  func.func @transform_0(%arg0: i32, %arg1: i32) -> (i32, i32, i32) {
    %c2_i32 = arith.constant 2 : i32
    %0 = arith.muli %c2_i32, %arg1 : i32
    %c0_i32 = arith.constant 0 : i32
    %1 = arith.subi %c0_i32, %0 : i32
    %2 = arith.muli %arg0, %1 : i32
    %3 = arith.addi %arg1, %2 : i32
    %c0_i32_0 = arith.constant 0 : i32
    %c0_i32_1 = arith.constant 0 : i32
    %c0_i32_2 = arith.constant 0 : i32
    return %3, %c0_i32_0, %c0_i32_1 : i32, i32, i32
  }
  func.func @transform_1(%arg0: i32, %arg1: i32) -> (i32, i32, i32) {
    %c0_i32 = arith.constant 0 : i32
    %c0_i32_0 = arith.constant 0 : i32
    %c0_i32_1 = arith.constant 0 : i32
    return %arg0, %c0_i32, %c0_i32_0 : i32, i32, i32
  }
  func.func @transform_2(%arg0: i32, %arg1: i32) -> (i32, i32, i32) {
    %c0_i32 = arith.constant 0 : i32
    %c0_i32_0 = arith.constant 0 : i32
    %c0_i32_1 = arith.constant 0 : i32
    return %arg0, %c0_i32, %c0_i32_0 : i32, i32, i32
  }
  func.func @transform_3(%arg0: i32, %arg1: i32) -> (i32, i32, i32) {
    %c0_i32 = arith.constant 0 : i32
    %c0_i32_0 = arith.constant 0 : i32
    %c0_i32_1 = arith.constant 0 : i32
    return %arg0, %c0_i32, %c0_i32_0 : i32, i32, i32
  }
  func.func @transform_4(%arg0: i32, %arg1: i32) -> (i32, i32, i32) {
    %c0_i32 = arith.constant 0 : i32
    %c0_i32_0 = arith.constant 0 : i32
    %c0_i32_1 = arith.constant 0 : i32
    return %arg0, %c0_i32, %c0_i32_0 : i32, i32, i32
  }
  func.func @transform_5(%arg0: i32, %arg1: i32) -> (i32, i32, i32) {
    %c2_i32 = arith.constant 2 : i32
    %0 = arith.muli %c2_i32, %arg1 : i32
    %c0_i32 = arith.constant 0 : i32
    %1 = arith.subi %c0_i32, %0 : i32
    %2 = arith.muli %arg0, %1 : i32
    %3 = arith.addi %arg1, %2 : i32
    %c0_i32_0 = arith.constant 0 : i32
    %c0_i32_1 = arith.constant 0 : i32
    return %3, %c0_i32_0, %arg0 : i32, i32, i32
  }
  func.func @transform_6(%arg0: i32, %arg1: i32) -> (i32, i32, i32) {
    %c0_i32 = arith.constant 0 : i32
    %c0_i32_0 = arith.constant 0 : i32
    %c0_i32_1 = arith.constant 0 : i32
    return %arg0, %c0_i32, %c0_i32_0 : i32, i32, i32
  }
}

</mosaic_0001>

<llo_original>
// kernel: tpu_custom_call.1
$region0: #{tpu_custom_call.1}
  #allocation0 [shape = 'u32[]', space=smem, size = 0x4, offset = 0x4, fixed_abs, tag = 'smem constant byte address 0x4 - core index']
  #allocation1 [shape = 'u32[72,128]{1,0:T(1,128)}', space=vmem, size = 0x9000, scoped, tag = 'internal scratch']
  #allocation2 [shape = 'f32[8,128]{1,0:T(8,128)}', space=vmem, size = 0x1000, scoped, tag = 'scratch operand']
  #allocation3 [shape = 'f32[8,8,128]{2,1,0:T(8,128)}', space=vmem, size = 0x8000, scoped, tag = 'scratch operand']
  %s0 = inlined_call_operand.vmem [shape: f32[8,8,4], index: 0, kind: input, shape index: {}]
  %s1 = inlined_call_operand.vmem [shape: f32[2,8,128], index: 1, kind: input, shape index: {}]
  %s2 = inlined_call_operand.vmem [shape: f32[2,4,128], index: 2, kind: input, shape index: {}]
  %s3 = inlined_call_operand.hbm [shape: f32[2,128,128], index: 3, kind: input, shape index: {}]
  %s4 = inlined_call_operand.vmem [shape: f32[2,1,128], index: 4, kind: input, shape index: {}]
  %s5 = inlined_call_operand.hbm [shape: f32[8,8,256], index: 5, kind: output, shape index: {0}]
  %s6 = inlined_call_operand.hbm [shape: f32[2,8,128], index: 6, kind: output, shape index: {1}]
  %7 = xla_tuple %s5, %s6
  %s8 = sld [smem:[#allocation0]]
  $region73: #{tpu_custom_call.1} parent=0
    _
  %s10 = ssub.s32 1, %s8
  %s11 = scalar_select 0, %s10, %s8
  $region1: #{tpu_custom_call.1} parent=0
    #allocation4 [shape = 'u8[131072]{0}', space=vmem, size = 0x20000, scoped, tag = 'input window, operand 3']
    #allocation5 [shape = 's32[2]{0}', space=sflag, size = 0x8, scoped, tag = 'scoped memory for tpu_custom_call.1']
    #allocation6 [shape = 's32[2]{0}', space=sflag, size = 0x8, scoped, tag = 'scoped memory for tpu_custom_call.1']
    #allocation7 [shape = 'u8[65536]{0}', space=vmem, size = 0x10000, scoped, tag = 'output window, operand 0']
    #allocation8 [shape = 'u8[8192]{0}', space=vmem, size = 0x2000, scoped, tag = 'output window, operand 1']
    #allocation9 [shape = 's32[2]{0}', space=sflag, size = 0x8, scoped, tag = 'scoped memory for tpu_custom_call.1']
    %12 = vsyncpa [#allocation5], 0
    %s13 = scalar_lea.sflag [#allocation5], 1
    %14 = vsyncpa %s13, 0
    %15 = vsyncpa [#allocation6], 0
    %s16 = scalar_lea.sflag [#allocation6], 1
    %17 = vsyncpa %s16, 0
    %18 = vsyncpa [#allocation9], 0
    %s19 = scalar_lea.sflag [#allocation9], 1
    %20 = vsyncpa %s19, 0
    loop: start=0, step=1, limit=4
    $region2: #{tpu_custom_call.1} parent=1 // loop_pre_header
      _
    $region3: #{tpu_custom_call.1} parent=1 // loop_header
      %s22 = sphi 0, %s26
      %p23 = scmp.ge.s32.totalorder %s22, 4
      %s29 = sphi 0, %s41
      %s30 = sphi 0, %s37
      %s31 = sphi 0, %s29
      %s32 = sphi 0, %s30
      %s33 = sphi 0, %s31
      %s34 = sphi 0, %s32
      %s52 = sphi 0, %s54
      %s55 = sphi 0, %s52
      %s56 = sphi 0, %s55
      %s72 = sphi 0, %s56
      %s78 = sphi 0, %s80
      %s81 = sphi 0, %s78
      %s82 = sphi 0, %s81
      %s98 = sphi 0, %s82
      %s104 = sphi 0, %s106
      %s107 = sphi 0, %s104
      %s108 = sphi 0, %s107
      %s124 = sphi 0, %s108
      %s130 = sphi 0, %s132
      %s133 = sphi 0, %s130
      %s134 = sphi 0, %s133
      %s150 = sphi 0, %s134
      %s156 = sphi 0, %s158
      %s159 = sphi 0, %s156
      %s160 = sphi 0, %s159
      %s176 = sphi 0, %s160
      %s192 = sphi 0, %s194
      %s195 = sphi 0, %s192
      %s196 = sphi 0, %s195
      %s212 = sphi 0, %s196
      %s218 = sphi 0, %s220
      %s221 = sphi 0, %s218
      %s222 = sphi 0, %s221
      %s238 = sphi 0, %s222
    $region4: #{tpu_custom_call.1} parent=1 // loop_header_branch
      %25 = sbr.rel (%p23) target = $region8
    $region5: #{tpu_custom_call.1} parent=1 // loop_body
      %s27 = ssub.s32 %s22, 1
      %s28 = ssub.s32 %s22, 2
      %s35 = sadd.s32 1, %s30
      %p36 = scmp.ge.s32.totalorder %s35, 1
      %s37 = scalar_select %p36, 0, %s35
      %s38 = sadd.s32 1, %s29
      %s39 = scalar_select %p36, %s38, %s29
      %p40 = scmp.ge.s32.totalorder %s39, 2
      %s41 = scalar_select %p40, 0, %s39
      %s42 = smul.u32 %s30, 2
      %s43 = ssub.s32 0, %s42
      %s44 = smul.u32 %s29, %s43
      %s45 = sadd.s32 %s30, %s44
      %s46 = smul.u32 %s37, 2
      %s47 = ssub.s32 0, %s46
      %s48 = smul.u32 %s41, %s47
      %s49 = sadd.s32 %s37, %s48
      %s50 = ssub.s32 %s45, %s49
      %p51 = scmp.eq.s32.totalorder %s50, 0
      %s53 = sadd.s32 %s52, 1
      %s54 = scalar_select %p51, %s52, %s53
      %p57 = pneg %p51
      %p58 = scmp.eq.s32.totalorder %s22, 1
      %p59 = por %p57, %p58
      %p60 = scmp.ne.s32.totalorder %s52, %s55
      %p61 = scmp.eq.s32.totalorder %s22, 0
      %p62 = por %p60, %p61
      %p63 = scmp.ne.s32.totalorder %s52, %s55
      %p64 = scmp.eq.s32.totalorder %s27, 1
      %p65 = por %p63, %p64
      %p66 = scmp.ne.s32.totalorder %s55, %s56
      %p67 = scmp.eq.s32.totalorder %s27, 0
      %p68 = por %p66, %p67
      %p69 = scmp.ne.s32.totalorder %s55, %s56
      %p70 = scmp.eq.s32.totalorder %s28, 1
      %p71 = por %p69, %p70
      %p73 = scmp.ne.s32.totalorder %s56, %s72
      %p74 = scmp.eq.s32.totalorder %s28, 0
      %p75 = por %p73, %p74
      %s76 = ssub.s32 %s29, %s41
      %p77 = scmp.eq.s32.totalorder %s76, 0
      %s79 = sadd.s32 %s78, 1
      %s80 = scalar_select %p77, %s78, %s79
      %p83 = pneg %p77
      %p84 = scmp.eq.s32.totalorder %s22, 1
      %p85 = por %p83, %p84
      %p86 = scmp.ne.s32.totalorder %s78, %s81
      %p87 = scmp.eq.s32.totalorder %s22, 0
      %p88 = por %p86, %p87
      %p89 = scmp.ne.s32.totalorder %s78, %s81
      %p90 = scmp.eq.s32.totalorder %s27, 1
      %p91 = por %p89, %p90
      %p92 = scmp.ne.s32.totalorder %s81, %s82
      %p93 = scmp.eq.s32.totalorder %s27, 0
      %p94 = por %p92, %p93
      %p95 = scmp.ne.s32.totalorder %s81, %s82
      %p96 = scmp.eq.s32.totalorder %s28, 1
      %p97 = por %p95, %p96
      %p99 = scmp.ne.s32.totalorder %s82, %s98
      %p100 = scmp.eq.s32.totalorder %s28, 0
      %p101 = por %p99, %p100
      %s102 = ssub.s32 %s29, %s41
      %p103 = scmp.eq.s32.totalorder %s102, 0
      %s105 = sadd.s32 %s104, 1
      %s106 = scalar_select %p103, %s104, %s105
      %p109 = pneg %p103
      %p110 = scmp.eq.s32.totalorder %s22, 1
      %p111 = por %p109, %p110
      %p112 = scmp.ne.s32.totalorder %s104, %s107
      %p113 = scmp.eq.s32.totalorder %s22, 0
      %p114 = por %p112, %p113
      %p115 = scmp.ne.s32.totalorder %s104, %s107
      %p116 = scmp.eq.s32.totalorder %s27, 1
      %p117 = por %p115, %p116
      %p118 = scmp.ne.s32.totalorder %s107, %s108
      %p119 = scmp.eq.s32.totalorder %s27, 0
      %p120 = por %p118, %p119
      %p121 = scmp.ne.s32.totalorder %s107, %s108
      %p122 = scmp.eq.s32.totalorder %s28, 1
      %p123 = por %p121, %p122
      %p125 = scmp.ne.s32.totalorder %s108, %s124
      %p126 = scmp.eq.s32.totalorder %s28, 0
      %p127 = por %p125, %p126
      %s128 = ssub.s32 %s29, %s41
      %p129 = scmp.eq.s32.totalorder %s128, 0
      %s131 = sadd.s32 %s130, 1
      %s132 = scalar_select %p129, %s130, %s131
      %p135 = pneg %p129
      %p136 = scmp.eq.s32.totalorder %s22, 1
      %p137 = por %p135, %p136
      %p138 = scmp.ne.s32.totalorder %s130, %s133
      %p139 = scmp.eq.s32.totalorder %s22, 0
      %p140 = por %p138, %p139
      %p141 = scmp.ne.s32.totalorder %s130, %s133
      %p142 = scmp.eq.s32.totalorder %s27, 1
      %p143 = por %p141, %p142
      %p144 = scmp.ne.s32.totalorder %s133, %s134
      %p145 = scmp.eq.s32.totalorder %s27, 0
      %p146 = por %p144, %p145
      %p147 = scmp.ne.s32.totalorder %s133, %s134
      %p148 = scmp.eq.s32.totalorder %s28, 1
      %p149 = por %p147, %p148
      %p151 = scmp.ne.s32.totalorder %s134, %s150
      %p152 = scmp.eq.s32.totalorder %s28, 0
      %p153 = por %p151, %p152
      %s154 = ssub.s32 %s29, %s41
      %p155 = scmp.eq.s32.totalorder %s154, 0
      %s157 = sadd.s32 %s156, 1
      %s158 = scalar_select %p155, %s156, %s157
      %p161 = pneg %p155
      %p162 = scmp.eq.s32.totalorder %s22, 1
      %p163 = por %p161, %p162
      %p164 = scmp.ne.s32.totalorder %s156, %s159
      %p165 = scmp.eq.s32.totalorder %s22, 0
      %p166 = por %p164, %p165
      %p167 = scmp.ne.s32.totalorder %s156, %s159
      %p168 = scmp.eq.s32.totalorder %s27, 1
      %p169 = por %p167, %p168
      %p170 = scmp.ne.s32.totalorder %s159, %s160
      %p171 = scmp.eq.s32.totalorder %s27, 0
      %p172 = por %p170, %p171
      %p173 = scmp.ne.s32.totalorder %s159, %s160
      %p174 = scmp.eq.s32.totalorder %s28, 1
      %p175 = por %p173, %p174
      %p177 = scmp.ne.s32.totalorder %s160, %s176
      %p178 = scmp.eq.s32.totalorder %s28, 0
      %p179 = por %p177, %p178
      %s180 = smul.u32 %s30, 2
      %s181 = ssub.s32 0, %s180
      %s182 = smul.u32 %s29, %s181
      %s183 = sadd.s32 %s30, %s182
      %s184 = smul.u32 %s37, 2
      %s185 = ssub.s32 0, %s184
      %s186 = smul.u32 %s41, %s185
      %s187 = sadd.s32 %s37, %s186
      %s188 = ssub.s32 %s183, %s187
      %s189 = ssub.s32 %s29, %s41
      %s190 = sor.u32 %s188, %s189
      %p191 = scmp.eq.s32.totalorder %s190, 0
      %s193 = sadd.s32 %s192, 1
      %s194 = scalar_select %p191, %s192, %s193
      %p197 = pneg %p191
      %p198 = scmp.eq.s32.totalorder %s22, 1
      %p199 = por %p197, %p198
      %p200 = scmp.ne.s32.totalorder %s192, %s195
      %p201 = scmp.eq.s32.totalorder %s22, 0
      %p202 = por %p200, %p201
      %p203 = scmp.ne.s32.totalorder %s192, %s195
      %p204 = scmp.eq.s32.totalorder %s27, 1
      %p205 = por %p203, %p204
      %p206 = scmp.ne.s32.totalorder %s195, %s196
      %p207 = scmp.eq.s32.totalorder %s27, 0
      %p208 = por %p206, %p207
      %p209 = scmp.ne.s32.totalorder %s195, %s196
      %p210 = scmp.eq.s32.totalorder %s28, 1
      %p211 = por %p209, %p210
      %p213 = scmp.ne.s32.totalorder %s196, %s212
      %p214 = scmp.eq.s32.totalorder %s28, 0
      %p215 = por %p213, %p214
      %s216 = ssub.s32 %s29, %s41
      %p217 = scmp.eq.s32.totalorder %s216, 0
      %s219 = sadd.s32 %s218, 1
      %s220 = scalar_select %p217, %s218, %s219
      %p223 = pneg %p217
      %p224 = scmp.eq.s32.totalorder %s22, 1
      %p225 = por %p223, %p224
      %p226 = scmp.ne.s32.totalorder %s218, %s221
      %p227 = scmp.eq.s32.totalorder %s22, 0
      %p228 = por %p226, %p227
      %p229 = scmp.ne.s32.totalorder %s218, %s221
      %p230 = scmp.eq.s32.totalorder %s27, 1
      %p231 = por %p229, %p230
      %p232 = scmp.ne.s32.totalorder %s221, %s222
      %p233 = scmp.eq.s32.totalorder %s27, 0
      %p234 = por %p232, %p233
      %p235 = scmp.ne.s32.totalorder %s221, %s222
      %p236 = scmp.eq.s32.totalorder %s28, 1
      %p237 = por %p235, %p236
      %p239 = scmp.ne.s32.totalorder %s222, %s238
      %p240 = scmp.eq.s32.totalorder %s28, 0
      %p241 = por %p239, %p240
      %p242 = scmp.le.s32.totalorder 1, %s22
      %p243 = scmp.lt.s32.totalorder %s22, 3
      %p244 = pnand %p242, %p243
      %p245 = pneg %p244
      // Predicated region
      $region9: #{tpu_custom_call.1} parent=5 // pred_check
        _
      $region10: #{tpu_custom_call.1} parent=5 // pred_check_branch
        %247 = sbr.rel (%p244) target = $region12
      $region11: #{tpu_custom_call.1} parent=5 // pred_region
        %s248 = ssub.s32 %s22, 1
      $region12: #{tpu_custom_call.1} parent=5 // pred_fallthru
        _
      %p249 = scmp.lt.s32.totalorder %s22, 2
      // Predicated region
      $region13: #{tpu_custom_call.1} parent=5 // pred_check
        %p250 = pneg %p249
      $region14: #{tpu_custom_call.1} parent=5 // pred_check_branch
        %252 = sbr.rel (%p250) target = $region16
      $region15: #{tpu_custom_call.1} parent=5 // pred_region
        // Predicated region
        $region17: #{tpu_custom_call.1} parent=15 // pred_check
          %p253 = pneg %p62
        $region18: #{tpu_custom_call.1} parent=15 // pred_check_branch
          %255 = sbr.rel (%p253) target = $region20
        $region19: #{tpu_custom_call.1} parent=15 // pred_region
          %s256 = smul.u32 %s30, 2
          %s257 = ssub.s32 0, %s256
          %s258 = smul.u32 %s29, %s257
          %s259 = sadd.s32 %s30, %s258
          %s260 = smul.u32 8, %s259
          %p261 = scmp.lt.s32.totalorder %s260, 7
          %s262 = scalar_select %p261, %s260, 7
          %s263 = smul.addr %s262, 8
          %s264 = scalar_lea.vmem %s0, %s263
          %s265 = smul.u32 %s30, 2
          %s266 = ssub.s32 0, %s265
          %s267 = smul.u32 %s29, %s266
          %s268 = sadd.s32 %s30, %s267
          %s269 = smul.u32 8, %s268
        $region20: #{tpu_custom_call.1} parent=15 // pred_fallthru
          _
        // Predicated region
        $region21: #{tpu_custom_call.1} parent=15 // pred_check
          %p270 = pneg %p88
        $region22: #{tpu_custom_call.1} parent=15 // pred_check_branch
          %272 = sbr.rel (%p270) target = $region24
        $region23: #{tpu_custom_call.1} parent=15 // pred_region
          %p273 = scmp.lt.s32.totalorder %s29, 1
          %s274 = scalar_select %p273, %s29, 1
          %s275 = smul.addr %s274, 8
          %s276 = scalar_lea.vmem %s1, %s275
        $region24: #{tpu_custom_call.1} parent=15 // pred_fallthru
          _
        // Predicated region
        $region25: #{tpu_custom_call.1} parent=15 // pred_check
          %p277 = pneg %p114
        $region26: #{tpu_custom_call.1} parent=15 // pred_check_branch
          %279 = sbr.rel (%p277) target = $region28
        $region27: #{tpu_custom_call.1} parent=15 // pred_region
          %p280 = scmp.lt.s32.totalorder %s29, 1
          %s281 = scalar_select %p280, %s29, 1
          %s282 = smul.addr %s281, 4
          %s283 = scalar_lea.vmem %s2, %s282
        $region28: #{tpu_custom_call.1} parent=15 // pred_fallthru
          _
        // Predicated region
        $region29: #{tpu_custom_call.1} parent=15 // pred_check
          %p284 = pneg %p140
        $region30: #{tpu_custom_call.1} parent=15 // pred_check_branch
          %286 = sbr.rel (%p284) target = $region32
        $region31: #{tpu_custom_call.1} parent=15 // pred_region
          %s287 = sand.u32 %s130, 1
          %s288 = scalar_lea.sflag [#allocation5], %s287
          %s289 = sand.u32 %s130, 1
          %s290 = smul.addr %s289, 128
          %s291 = scalar_lea.vmem [#allocation4], %s290
          %293 = vsyncadd %s288, 0
          %s294 = smul.addr %s29, 16
          %s295 = smul.addr %s294, 8
          %s296 = scalar_lea.hbm %s3, %s295
          %s297 = sshll.u32 %s296, 4
          %s298 = int_to_ptr.hbm [resolvable:$true] %s297
          %s299 = sshll.u32 %s291, 4
          %s300 = int_to_ptr.vmem [resolvable:$true] %s299
          %305 = dma.hbm_to_vmem [thread:$0]  %s298, 2048, %s300, %s288, 128, 128, 8
        $region32: #{tpu_custom_call.1} parent=15 // pred_fallthru
          _
        // Predicated region
        $region33: #{tpu_custom_call.1} parent=15 // pred_check
          %p306 = pneg %p166
        $region34: #{tpu_custom_call.1} parent=15 // pred_check_branch
          %308 = sbr.rel (%p306) target = $region36
        $region35: #{tpu_custom_call.1} parent=15 // pred_region
          %p309 = scmp.lt.s32.totalorder %s29, 1
          %s310 = scalar_select %p309, %s29, 1
          %s311 = scalar_lea.vmem %s4, %s310
        $region36: #{tpu_custom_call.1} parent=15 // pred_fallthru
          _
      $region16: #{tpu_custom_call.1} parent=5 // pred_fallthru
        _
      %p312 = scmp.le.s32.totalorder 1, %s22
      %p313 = scmp.lt.s32.totalorder %s22, 3
      %p314 = pnand %p312, %p313
      %p315 = pneg %p314
      // Predicated region
      $region37: #{tpu_custom_call.1} parent=5 // pred_check
        _
      $region38: #{tpu_custom_call.1} parent=5 // pred_check_branch
        %317 = sbr.rel (%p314) target = $region40
      $region39: #{tpu_custom_call.1} parent=5 // pred_region
        %s318 = ssub.s32 %s22, 1
        %s319 = sand.u32 %s133, 1
        %s320 = scalar_lea.sflag [#allocation5], %s319
        %s321 = sand.u32 %s133, 1
        %s322 = smul.addr %s321, 128
        %s323 = scalar_lea.vmem [#allocation4], %s322
        // Predicated region
        $region41: #{tpu_custom_call.1} parent=39 // pred_check
          %p324 = pneg %p146
        $region42: #{tpu_custom_call.1} parent=39 // pred_check_branch
          %326 = sbr.rel (%p324) target = $region44
        $region43: #{tpu_custom_call.1} parent=39 // pred_region
          %328 = dma.done %s320, 2048
        $region44: #{tpu_custom_call.1} parent=39 // pred_fallthru
          _
        %s329 = smul.u32 %s32, 2
        %s330 = ssub.s32 0, %s329
        %s331 = smul.u32 %s31, %s330
        %s332 = sadd.s32 %s32, %s331
        %s333 = smul.u32 8, %s332
        %p334 = scmp.lt.s32.totalorder %s333, 7
        %s335 = scalar_select %p334, %s333, 7
        %s336 = smul.addr %s335, 8
        %s337 = scalar_lea.vmem %s0, %s336
        %p338 = pneg %p68
        %p339 = pneg %p65
        %p340 = scmp.lt.s32.totalorder %s31, 1
        %s341 = scalar_select %p340, %s31, 1
        %s342 = smul.addr %s341, 8
        %s343 = scalar_lea.vmem %s1, %s342
        %p344 = pneg %p94
        %p345 = pneg %p91
        %p346 = scmp.lt.s32.totalorder %s31, 1
        %s347 = scalar_select %p346, %s31, 1
        %s348 = smul.addr %s347, 4
        %s349 = scalar_lea.vmem %s2, %s348
        %p350 = pneg %p120
        %p351 = pneg %p117
        %s352 = sand.u32 %s133, 1
        %s353 = scalar_lea.sflag [#allocation5], %s352
        %s354 = sand.u32 %s133, 1
        %s355 = smul.addr %s354, 128
        %s356 = scalar_lea.vmem [#allocation4], %s355
        %p357 = pneg %p146
        %p358 = pneg %p143
        %p359 = scmp.lt.s32.totalorder %s31, 1
        %s360 = scalar_select %p359, %s31, 1
        %s361 = scalar_lea.vmem %s4, %s360
        %p362 = pneg %p172
        %p363 = pneg %p169
        %p364 = pneg %p208
        %p365 = pneg %p205
        %s366 = sand.u32 %s195, 1
        %s367 = scalar_lea.sflag [#allocation6], %s366
        %s368 = sand.u32 %s195, 1
        %s369 = smul.addr %s368, 64
        %s370 = scalar_lea.vmem [#allocation7], %s369
        %p371 = pneg %p234
        %p372 = pneg %p231
        %s373 = sand.u32 %s221, 1
        %s374 = scalar_lea.sflag [#allocation9], %s373
        %s375 = sand.u32 %s221, 1
        %s376 = smul.addr %s375, 8
        %s377 = scalar_lea.vmem [#allocation8], %s376
        %s378 = smul.u32 %s32, 2
        %s379 = ssub.s32 0, %s378
        %s380 = smul.u32 %s31, %s379
        %s381 = sadd.s32 %s32, %s380
        %s382 = smul.u32 8, %s381
        %p383 = scmp.lt.s32.totalorder %s382, 7
        %s384 = scalar_select %p383, %s382, 7
        %s385 = smul.addr %s384, 8
        %s386 = scalar_lea.vmem %s0, %s385
        %s387 = smul.u32 %s32, 2
        %s388 = ssub.s32 0, %s387
        %s389 = smul.u32 %s31, %s388
        %s390 = sadd.s32 %s32, %s389
        %s391 = smul.u32 8, %s390
        %p392 = scmp.lt.s32.totalorder %s31, 1
        %s393 = scalar_select %p392, %s31, 1
        %s394 = smul.addr %s393, 8
        %s395 = scalar_lea.vmem %s1, %s394
        %p396 = scmp.lt.s32.totalorder %s31, 1
        %s397 = scalar_select %p396, %s31, 1
        %s398 = smul.addr %s397, 4
        %s399 = scalar_lea.vmem %s2, %s398
        %p400 = scmp.lt.s32.totalorder %s31, 1
        %s401 = scalar_select %p400, %s31, 1
        %s402 = scalar_lea.vmem %s4, %s401
        %s403 = smul.u32 %s32, 2
        %s404 = ssub.s32 0, %s403
        %s405 = smul.u32 %s31, %s404
        %s406 = sadd.s32 %s32, %s405
        %s407 = smul.u32 8, %s406
        %p408 = scmp.eq.s32.totalorder %s32, 0
        // Predicated region
        $region45: #{tpu_custom_call.1} parent=39 // pred_check
          %p409 = pneg %p408
        $region46: #{tpu_custom_call.1} parent=39 // pred_check_branch
          %411 = sbr.rel (%p409) target = $region48
        $region47: #{tpu_custom_call.1} parent=39 // pred_region
          %v412 = vld [vmem:[%s395] sm:$0xff]
          %413 = vst [vmem:[#allocation2] sm:$0xff] %v412
        $region48: #{tpu_custom_call.1} parent=39 // pred_fallthru
          _
        %v414 = vld [vmem:[%s386] sm:$0xff]
        %v415 = vld [vmem:[%s386 + $0x8] sm:$0xff]
        %v416 = vld [vmem:[%s386 + $0x10] sm:$0xff]
        %v417 = vld [vmem:[%s386 + $0x18] sm:$0xff]
        %v418 = vld [vmem:[%s386 + $0x20] sm:$0xff]
        %v419 = vld [vmem:[%s386 + $0x28] sm:$0xff]
        %v420 = vld [vmem:[%s386 + $0x30] sm:$0xff]
        %v421 = vld [vmem:[%s386 + $0x38] sm:$0xff]
        %v422 = vld [vmem:[%s399] sm:$0xf]
        %v423 = vld [vmem:[%s402] sm:$0x1]
        %v425 = vperm.slane %v423, 0
        %vm427 = vcmask 31744
        %v429 = vsel %vm427, %v414, 0
        %v432 = vsel %vm427, %v415, 0
        %v435 = vsel %vm427, %v416, 0
        %v438 = vsel %vm427, %v417, 0
        %v441 = vsel %vm427, %v418, 0
        %v444 = vsel %vm427, %v419, 0
        %v447 = vsel %vm427, %v420, 0
        %v450 = vsel %vm427, %v421, 0
        %vm452 = vcmask 1043456
        %v454 = vsel %vm452, %v422, 0
        %456 = vmatpush.msra.mxu0 0.0
        %457 = vmatpush.msra.mxu0 0.0
        %458 = vmatpush.msra.mxu0 0.0
        %459 = vmatpush.msra.mxu0 0.0
        %460 = vmatpush.msra.mxu0 0.0
        %461 = vmatpush.msra.mxu0 0.0
        %462 = vmatpush.msra.mxu0 0.0
        %463 = vmatpush.msra.mxu0 0.0
        %464 = vmatpush.msra.mxu0 0.0
        %465 = vmatpush.msra.mxu0 0.0
        %466 = vmatpush.msra.mxu0 0.0
        %467 = vmatpush.msra.mxu0 0.0
        %468 = vmatpush.msra.mxu0 0.0
        %469 = vmatpush.msra.mxu0 0.0
        %470 = vmatpush.msra.mxu0 0.0
        %471 = vmatpush.msra.mxu0 %v454
        %472 = vmatmul.f32.gmra.mxu0 %v429
        %v473 = vpop.f32.mrf.mxu0
        %v474 = vadd.f32 %v425, %v473
        %475 = vmatmul.f32.gmra.mxu0 %v432
        %v476 = vpop.f32.mrf.mxu0
        %v477 = vadd.f32 %v425, %v476
        %478 = vmatmul.f32.gmra.mxu0 %v435
        %v479 = vpop.f32.mrf.mxu0
        %v480 = vadd.f32 %v425, %v479
        %481 = vmatmul.f32.gmra.mxu0 %v438
        %v482 = vpop.f32.mrf.mxu0
        %v483 = vadd.f32 %v425, %v482
        %484 = vmatmul.f32.gmra.mxu0 %v441
        %v485 = vpop.f32.mrf.mxu0
        %v486 = vadd.f32 %v425, %v485
        %487 = vmatmul.f32.gmra.mxu0 %v444
        %v488 = vpop.f32.mrf.mxu0
        %v489 = vadd.f32 %v425, %v488
        %490 = vmatmul.f32.gmra.mxu0 %v447
        %v491 = vpop.f32.mrf.mxu0
        %v492 = vadd.f32 %v425, %v491
        %493 = vmatmul.f32.gmra.mxu0 %v450
        %v494 = vpop.f32.mrf.mxu0
        %v495 = vadd.f32 %v425, %v494
        %496 = vdwg.mxu0
        %497 = vst [vmem:[#allocation3] sm:$0xff] %v474
        %498 = vst [vmem:[#allocation3 + $0x8] sm:$0xff] %v477
        %499 = vst [vmem:[#allocation3 + $0x10] sm:$0xff] %v480
        %500 = vst [vmem:[#allocation3 + $0x18] sm:$0xff] %v483
        %501 = vst [vmem:[#allocation3 + $0x20] sm:$0xff] %v486
        %502 = vst [vmem:[#allocation3 + $0x28] sm:$0xff] %v489
        %503 = vst [vmem:[#allocation3 + $0x30] sm:$0xff] %v492
        %504 = vst [vmem:[#allocation3 + $0x38] sm:$0xff] %v495
        %v505 = vld [vmem:[%s323] sm:$0xff]
        %v506 = vld [vmem:[%s323 + $0x8] sm:$0xff]
        %v507 = vld [vmem:[%s323 + $0x10] sm:$0xff]
        %v508 = vld [vmem:[%s323 + $0x18] sm:$0xff]
        %v509 = vld [vmem:[%s323 + $0x20] sm:$0xff]
        %v510 = vld [vmem:[%s323 + $0x28] sm:$0xff]
        %v511 = vld [vmem:[%s323 + $0x30] sm:$0xff]
        %v512 = vld [vmem:[%s323 + $0x38] sm:$0xff]
        %v513 = vld [vmem:[%s323 + $0x40] sm:$0xff]
        %v514 = vld [vmem:[%s323 + $0x48] sm:$0xff]
        %v515 = vld [vmem:[%s323 + $0x50] sm:$0xff]
        %v516 = vld [vmem:[%s323 + $0x58] sm:$0xff]
        %v517 = vld [vmem:[%s323 + $0x60] sm:$0xff]
        %v518 = vld [vmem:[%s323 + $0x68] sm:$0xff]
        %v519 = vld [vmem:[%s323 + $0x70] sm:$0xff]
        %v520 = vld [vmem:[%s323 + $0x78] sm:$0xff]
        %v521 = vld [vmem:[#allocation2] sm:$0xff]
        %s522 = smul.u32 %s31, 7
        %s523 = smul.u32 %s522, 8
        %s524 = scalar_lea.vmem [#allocation3], %s523
        %v525 = vld [vmem:[%s524] sm:$0xff]
        %526 = vmatpush.msra.mxu0 %v520
        %527 = vmatpush.msra.mxu0 %v519
        %528 = vmatpush.msra.mxu0 %v518
        %529 = vmatpush.msra.mxu0 %v517
        %530 = vmatpush.msra.mxu0 %v516
        %531 = vmatpush.msra.mxu0 %v515
        %532 = vmatpush.msra.mxu0 %v514
        %533 = vmatpush.msra.mxu0 %v513
        %534 = vmatpush.msra.mxu0 %v512
        %535 = vmatpush.msra.mxu0 %v511
        %536 = vmatpush.msra.mxu0 %v510
        %537 = vmatpush.msra.mxu0 %v509
        %538 = vmatpush.msra.mxu0 %v508
        %539 = vmatpush.msra.mxu0 %v507
        %540 = vmatpush.msra.mxu0 %v506
        %541 = vmatpush.msra.mxu0 %v505
        %542 = vmatmul.f32.gmra.mxu0 %v521
        %v543 = vpop.f32.mrf.mxu0
        %v544 = vadd.f32 0.0, %v543
        %545 = vdwg.mxu0
        %v546 = vadd.f32 %v525, %v544
        %v547 = vtanh.pop %v546
        %s548 = scalar_lea.vmem %s370, %s523 [#allocation7]
        %549 = vst [vmem:[%s548] sm:$0xff] %v547
        %s550 = smul.u32 %s31, 5
        %s551 = sadd.s32 %s550, 1
        %s552 = smul.u32 %s551, 8
        %s553 = scalar_lea.vmem [#allocation3], %s552
        %v554 = vld [vmem:[%s553] sm:$0xff]
        %555 = vmatpush.msra.mxu0 %v520
        %556 = vmatpush.msra.mxu0 %v519
        %557 = vmatpush.msra.mxu0 %v518
        %558 = vmatpush.msra.mxu0 %v517
        %559 = vmatpush.msra.mxu0 %v516
        %560 = vmatpush.msra.mxu0 %v515
        %561 = vmatpush.msra.mxu0 %v514
        %562 = vmatpush.msra.mxu0 %v513
        %563 = vmatpush.msra.mxu0 %v512
        %564 = vmatpush.msra.mxu0 %v511
        %565 = vmatpush.msra.mxu0 %v510
        %566 = vmatpush.msra.mxu0 %v509
        %567 = vmatpush.msra.mxu0 %v508
        %568 = vmatpush.msra.mxu0 %v507
        %569 = vmatpush.msra.mxu0 %v506
        %570 = vmatpush.msra.mxu0 %v505
        %571 = vmatmul.f32.gmra.mxu0 %v547
        %v572 = vpop.f32.mrf.mxu0
        %v573 = vadd.f32 0.0, %v572
        %574 = vdwg.mxu0
        %v575 = vadd.f32 %v554, %v573
        %v576 = vtanh.pop %v575
        %s577 = scalar_lea.vmem %s370, %s552 [#allocation7]
        %578 = vst [vmem:[%s577] sm:$0xff] %v576
        %s579 = smul.u32 %s31, 3
        %s580 = sadd.s32 %s579, 2
        %s581 = smul.u32 %s580, 8
        %s582 = scalar_lea.vmem [#allocation3], %s581
        %v583 = vld [vmem:[%s582] sm:$0xff]
        %584 = vmatpush.msra.mxu0 %v520
        %585 = vmatpush.msra.mxu0 %v519
        %586 = vmatpush.msra.mxu0 %v518
        %587 = vmatpush.msra.mxu0 %v517
        %588 = vmatpush.msra.mxu0 %v516
        %589 = vmatpush.msra.mxu0 %v515
        %590 = vmatpush.msra.mxu0 %v514
        %591 = vmatpush.msra.mxu0 %v513
        %592 = vmatpush.msra.mxu0 %v512
        %593 = vmatpush.msra.mxu0 %v511
        %594 = vmatpush.msra.mxu0 %v510
        %595 = vmatpush.msra.mxu0 %v509
        %596 = vmatpush.msra.mxu0 %v508
        %597 = vmatpush.msra.mxu0 %v507
        %598 = vmatpush.msra.mxu0 %v506
        %599 = vmatpush.msra.mxu0 %v505
        %600 = vmatmul.f32.gmra.mxu0 %v576
        %v601 = vpop.f32.mrf.mxu0
        %v602 = vadd.f32 0.0, %v601
        %603 = vdwg.mxu0
        %v604 = vadd.f32 %v583, %v602
        %v605 = vtanh.pop %v604
        %s606 = scalar_lea.vmem %s370, %s581 [#allocation7]
        %607 = vst [vmem:[%s606] sm:$0xff] %v605
        %s608 = sadd.s32 %s31, 3
        %s609 = smul.u32 %s608, 8
        %s610 = scalar_lea.vmem [#allocation3], %s609
        %v611 = vld [vmem:[%s610] sm:$0xff]
        %612 = vmatpush.msra.mxu0 %v520
        %613 = vmatpush.msra.mxu0 %v519
        %614 = vmatpush.msra.mxu0 %v518
        %615 = vmatpush.msra.mxu0 %v517
        %616 = vmatpush.msra.mxu0 %v516
        %617 = vmatpush.msra.mxu0 %v515
        %618 = vmatpush.msra.mxu0 %v514
        %619 = vmatpush.msra.mxu0 %v513
        %620 = vmatpush.msra.mxu0 %v512
        %621 = vmatpush.msra.mxu0 %v511
        %622 = vmatpush.msra.mxu0 %v510
        %623 = vmatpush.msra.mxu0 %v509
        %624 = vmatpush.msra.mxu0 %v508
        %625 = vmatpush.msra.mxu0 %v507
        %626 = vmatpush.msra.mxu0 %v506
        %627 = vmatpush.msra.mxu0 %v505
        %628 = vmatmul.f32.gmra.mxu0 %v605
        %v629 = vpop.f32.mrf.mxu0
        %v630 = vadd.f32 0.0, %v629
        %631 = vdwg.mxu0
        %v632 = vadd.f32 %v611, %v630
        %v633 = vtanh.pop %v632
        %s634 = scalar_lea.vmem %s370, %s609 [#allocation7]
        %635 = vst [vmem:[%s634] sm:$0xff] %v633
        %s636 = ssub.s32 4, %s31
        %s637 = smul.u32 %s636, 8
        %s638 = scalar_lea.vmem [#allocation3], %s637
        %v639 = vld [vmem:[%s638] sm:$0xff]
        %640 = vmatpush.msra.mxu0 %v520
        %641 = vmatpush.msra.mxu0 %v519
        %642 = vmatpush.msra.mxu0 %v518
        %643 = vmatpush.msra.mxu0 %v517
        %644 = vmatpush.msra.mxu0 %v516
        %645 = vmatpush.msra.mxu0 %v515
        %646 = vmatpush.msra.mxu0 %v514
        %647 = vmatpush.msra.mxu0 %v513
        %648 = vmatpush.msra.mxu0 %v512
        %649 = vmatpush.msra.mxu0 %v511
        %650 = vmatpush.msra.mxu0 %v510
        %651 = vmatpush.msra.mxu0 %v509
        %652 = vmatpush.msra.mxu0 %v508
        %653 = vmatpush.msra.mxu0 %v507
        %654 = vmatpush.msra.mxu0 %v506
        %655 = vmatpush.msra.mxu0 %v505
        %656 = vmatmul.f32.gmra.mxu0 %v633
        %v657 = vpop.f32.mrf.mxu0
        %v658 = vadd.f32 0.0, %v657
        %659 = vdwg.mxu0
        %v660 = vadd.f32 %v639, %v658
        %v661 = vtanh.pop %v660
        %s662 = scalar_lea.vmem %s370, %s637 [#allocation7]
        %663 = vst [vmem:[%s662] sm:$0xff] %v661
        %s664 = smul.u32 %s31, 4294967293
        %s665 = sadd.s32 %s664, 5
        %s666 = smul.u32 %s665, 8
        %s667 = scalar_lea.vmem [#allocation3], %s666
        %v668 = vld [vmem:[%s667] sm:$0xff]
        %669 = vmatpush.msra.mxu0 %v520
        %670 = vmatpush.msra.mxu0 %v519
        %671 = vmatpush.msra.mxu0 %v518
        %672 = vmatpush.msra.mxu0 %v517
        %673 = vmatpush.msra.mxu0 %v516
        %674 = vmatpush.msra.mxu0 %v515
        %675 = vmatpush.msra.mxu0 %v514
        %676 = vmatpush.msra.mxu0 %v513
        %677 = vmatpush.msra.mxu0 %v512
        %678 = vmatpush.msra.mxu0 %v511
        %679 = vmatpush.msra.mxu0 %v510
        %680 = vmatpush.msra.mxu0 %v509
        %681 = vmatpush.msra.mxu0 %v508
        %682 = vmatpush.msra.mxu0 %v507
        %683 = vmatpush.msra.mxu0 %v506
        %684 = vmatpush.msra.mxu0 %v505
        %685 = vmatmul.f32.gmra.mxu0 %v661
        %v686 = vpop.f32.mrf.mxu0
        %v687 = vadd.f32 0.0, %v686
        %688 = vdwg.mxu0
        %v689 = vadd.f32 %v668, %v687
        %v690 = vtanh.pop %v689
        %s691 = scalar_lea.vmem %s370, %s666 [#allocation7]
        %692 = vst [vmem:[%s691] sm:$0xff] %v690
        %s693 = smul.u32 %s31, 4294967291
        %s694 = sadd.s32 %s693, 6
        %s695 = smul.u32 %s694, 8
        %s696 = scalar_lea.vmem [#allocation3], %s695
        %v697 = vld [vmem:[%s696] sm:$0xff]
        %698 = vmatpush.msra.mxu0 %v520
        %699 = vmatpush.msra.mxu0 %v519
        %700 = vmatpush.msra.mxu0 %v518
        %701 = vmatpush.msra.mxu0 %v517
        %702 = vmatpush.msra.mxu0 %v516
        %703 = vmatpush.msra.mxu0 %v515
        %704 = vmatpush.msra.mxu0 %v514
        %705 = vmatpush.msra.mxu0 %v513
        %706 = vmatpush.msra.mxu0 %v512
        %707 = vmatpush.msra.mxu0 %v511
        %708 = vmatpush.msra.mxu0 %v510
        %709 = vmatpush.msra.mxu0 %v509
        %710 = vmatpush.msra.mxu0 %v508
        %711 = vmatpush.msra.mxu0 %v507
        %712 = vmatpush.msra.mxu0 %v506
        %713 = vmatpush.msra.mxu0 %v505
        %714 = vmatmul.f32.gmra.mxu0 %v690
        %v715 = vpop.f32.mrf.mxu0
        %v716 = vadd.f32 0.0, %v715
        %717 = vdwg.mxu0
        %v718 = vadd.f32 %v697, %v716
        %v719 = vtanh.pop %v718
        %s720 = scalar_lea.vmem %s370, %s695 [#allocation7]
        %721 = vst [vmem:[%s720] sm:$0xff] %v719
        %s722 = smul.u32 %s31, 4294967289
        %s723 = sadd.s32 %s722, 7
        %s724 = smul.u32 %s723, 8
        %s725 = scalar_lea.vmem [#allocation3], %s724
        %v726 = vld [vmem:[%s725] sm:$0xff]
        %727 = vmatpush.msra.mxu0 %v520
        %728 = vmatpush.msra.mxu0 %v519
        %729 = vmatpush.msra.mxu0 %v518
        %730 = vmatpush.msra.mxu0 %v517
        %731 = vmatpush.msra.mxu0 %v516
        %732 = vmatpush.msra.mxu0 %v515
        %733 = vmatpush.msra.mxu0 %v514
        %734 = vmatpush.msra.mxu0 %v513
        %735 = vmatpush.msra.mxu0 %v512
        %736 = vmatpush.msra.mxu0 %v511
        %737 = vmatpush.msra.mxu0 %v510
        %738 = vmatpush.msra.mxu0 %v509
        %739 = vmatpush.msra.mxu0 %v508
        %740 = vmatpush.msra.mxu0 %v507
        %741 = vmatpush.msra.mxu0 %v506
        %742 = vmatpush.msra.mxu0 %v505
        %743 = vmatmul.f32.gmra.mxu0 %v719
        %v744 = vpop.f32.mrf.mxu0
        %v745 = vadd.f32 0.0, %v744
        %746 = vdwg.mxu0
        %v747 = vadd.f32 %v726, %v745
        %v748 = vtanh.pop %v747
        %s749 = scalar_lea.vmem %s370, %s724 [#allocation7]
        %750 = vst [vmem:[%s749] sm:$0xff] %v748
        %751 = vst [vmem:[#allocation2] sm:$0xff] %v748
        // Predicated region
        $region49: #{tpu_custom_call.1} parent=39 // pred_check
          %p752 = pneg %p408
        $region50: #{tpu_custom_call.1} parent=39 // pred_check_branch
          %754 = sbr.rel (%p752) target = $region52
        $region51: #{tpu_custom_call.1} parent=39 // pred_region
          %755 = vst [vmem:[%s377] sm:$0xff] %v748
        $region52: #{tpu_custom_call.1} parent=39 // pred_fallthru
          _
        %s756 = sand.u32 %s195, 1
        %s757 = scalar_lea.sflag [#allocation6], %s756
        %s758 = sand.u32 %s195, 1
        %s759 = smul.addr %s758, 64
        %s760 = scalar_lea.vmem [#allocation7], %s759
        %s761 = sand.u32 %s221, 1
        %s762 = scalar_lea.sflag [#allocation9], %s761
        %s763 = sand.u32 %s221, 1
        %s764 = smul.addr %s763, 8
        %s765 = scalar_lea.vmem [#allocation8], %s764
        // Predicated region
        $region53: #{tpu_custom_call.1} parent=39 // pred_check
          %p766 = pneg %p205
        $region54: #{tpu_custom_call.1} parent=39 // pred_check_branch
          %768 = sbr.rel (%p766) target = $region56
        $region55: #{tpu_custom_call.1} parent=39 // pred_region
          %s769 = smul.u32 %s32, 2
          %s770 = ssub.s32 0, %s769
          %s771 = smul.u32 %s31, %s770
          %s772 = sadd.s32 %s32, %s771
          %s773 = smul.u32 8, %s772
          %775 = vsyncadd %s757, 0
          %s776 = smul.addr %s773, 2
          %s777 = sadd.s32 %s31, %s776
          %s778 = smul.addr %s777, 8
          %s779 = scalar_lea.hbm %s5, %s778
          %s780 = sshll.u32 %s760, 4
          %s781 = int_to_ptr.vmem [resolvable:$true] %s780
          %s782 = sshll.u32 %s779, 4
          %s783 = int_to_ptr.hbm [resolvable:$true] %s782
          %788 = dma.vmem_to_hbm [thread:$0]  %s781, 1024, %s783, %s757, 128, 256, 8
        $region56: #{tpu_custom_call.1} parent=39 // pred_fallthru
          _
        // Predicated region
        $region57: #{tpu_custom_call.1} parent=39 // pred_check
          %p789 = pneg %p231
        $region58: #{tpu_custom_call.1} parent=39 // pred_check_branch
          %791 = sbr.rel (%p789) target = $region60
        $region59: #{tpu_custom_call.1} parent=39 // pred_region
          %793 = vsyncadd %s762, 0
          %s794 = smul.addr %s31, 8
          %s795 = scalar_lea.hbm %s6, %s794
          %s797 = sshll.u32 %s765, 4
          %s798 = int_to_ptr.vmem [resolvable:$true] %s797
          %s799 = sshll.u32 %s795, 4
          %s800 = int_to_ptr.hbm [resolvable:$true] %s799
          %802 = dma.vmem_to_hbm [thread:$0]  %s798, 128, %s800, %s762
        $region60: #{tpu_custom_call.1} parent=39 // pred_fallthru
          _
      $region40: #{tpu_custom_call.1} parent=5 // pred_fallthru
        _
      %p803 = scmp.le.s32.totalorder 2, %s22
      // Predicated region
      $region61: #{tpu_custom_call.1} parent=5 // pred_check
        %p804 = pneg %p803
      $region62: #{tpu_custom_call.1} parent=5 // pred_check_branch
        %806 = sbr.rel (%p804) target = $region64
      $region63: #{tpu_custom_call.1} parent=5 // pred_region
        %s807 = ssub.s32 %s22, 2
        // Predicated region
        $region65: #{tpu_custom_call.1} parent=63 // pred_check
          %p808 = pneg %p211
        $region66: #{tpu_custom_call.1} parent=63 // pred_check_branch
          %810 = sbr.rel (%p808) target = $region68
        $region67: #{tpu_custom_call.1} parent=63 // pred_region
          %s811 = sand.u32 %s196, 1
          %s812 = scalar_lea.sflag [#allocation6], %s811
          %s813 = sand.u32 %s196, 1
          %s814 = smul.addr %s813, 64
          %s815 = scalar_lea.vmem [#allocation7], %s814
          %817 = dma.done %s812, 1024
        $region68: #{tpu_custom_call.1} parent=63 // pred_fallthru
          _
        // Predicated region
        $region69: #{tpu_custom_call.1} parent=63 // pred_check
          %p818 = pneg %p237
        $region70: #{tpu_custom_call.1} parent=63 // pred_check_branch
          %820 = sbr.rel (%p818) target = $region72
        $region71: #{tpu_custom_call.1} parent=63 // pred_region
          %s821 = sand.u32 %s222, 1
          %s822 = scalar_lea.sflag [#allocation9], %s821
          %s823 = sand.u32 %s222, 1
          %s824 = smul.addr %s823, 8
          %s825 = scalar_lea.vmem [#allocation8], %s824
          %827 = dma.done %s822, 128
        $region72: #{tpu_custom_call.1} parent=63 // pred_fallthru
          _
      $region64: #{tpu_custom_call.1} parent=5 // pred_fallthru
        _
    $region6: #{tpu_custom_call.1} parent=1 // loop_footer
      %s26 = sadd.s32 1, %s22
    $region7: #{tpu_custom_call.1} parent=1 // loop_footer_branch
      %21 = sbr.rel target = $region3
    $region8: #{tpu_custom_call.1} parent=1 // loop_exit
      _
    %828 = vsyncpa [#allocation5], 1
    %s829 = scalar_lea.sflag [#allocation5], 1
    %830 = vsyncpa %s829, 1
    %831 = vsyncpa [#allocation6], 1
    %s832 = scalar_lea.sflag [#allocation6], 1
    %833 = vsyncpa %s832, 1
    %834 = vsyncpa [#allocation9], 1
    %s835 = scalar_lea.sflag [#allocation9], 1
    %836 = vsyncpa %s835, 1

</llo_original>
